<compile_context>
chip_gen: v7x
topology: tpu7x:2x2x1
jax: 0.10.0
libtpu: 0.0.40
codegen_flags: <defaults>
</compile_context>

<pallas_src>
import functools

import jax
import jax.numpy as jnp
from jax import lax
from jax.experimental import pallas as pl
from jax.experimental.pallas import tpu as pltpu

_MIB = 1024 * 1024
_VMEM_LIMIT = 48 * _MIB          # conservative: leaves headroom on v7x (64 MiB)
_FUSED_BUDGET = 24 * _MIB        # budget for the VMEM-resident A_hat (x2 buf)
_RESIDENT_Z_BUDGET = 24 * _MIB   # budget for the VMEM-resident Z slab (x2 buf)


def _round_up(x, m):
    return (x + m - 1) // m * m


def _pick_tile(n, cap):
    """Largest multiple of 128 that divides n and is <= cap."""
    t = min(cap, n)
    t -= t % 128
    while n % t:
        t -= 128
    return t


# ---------------------------------------------------------------------------
# Kernel 1 (one-time): column degrees of (A + I)  ->  D^{-1/2}   (shape [1, N])
# ---------------------------------------------------------------------------
def _dinv_kernel(adj_ref, dinv_ref, acc_ref):
    r = pl.program_id(1)  # row-tile reduction axis (last)

    @pl.when(r == 0)
    def _():
        acc_ref[...] = jnp.zeros_like(acc_ref)

    a = adj_ref[...].astype(jnp.float32)
    # Per-sublane partial sums: (tile, tile) -> (tile//8, 8, tile) is a free
    # re-view of the vreg layout, so the axis-0 sum is pure full-vreg vadds
    # (no XLU work until the final step).
    tr = a.shape[0]
    acc_ref[...] += jnp.sum(a.reshape(tr // 8, 8, a.shape[1]), axis=0)

    @pl.when(r == pl.num_programs(1) - 1)
    def _():
        # Single cross-sublane reduce + self-loop degree + rsqrt.
        deg = jnp.sum(acc_ref[...], axis=0, keepdims=True) + 1.0
        dinv_ref[...] = jnp.where(deg > 0.0, lax.rsqrt(deg), 0.0)


def _compute_dinv(adj, *, tile):
    n = adj.shape[0]
    return pl.pallas_call(
        _dinv_kernel,
        out_shape=jax.ShapeDtypeStruct((1, n), jnp.float32),
        grid=(n // tile, n // tile),                  # (column tiles, row tiles)
        in_specs=[pl.BlockSpec((tile, tile), lambda j, r: (r, j))],
        out_specs=pl.BlockSpec((1, tile), lambda j, r: (0, j)),
        scratch_shapes=[pltpu.VMEM((8, tile), jnp.float32)],
        compiler_params=pltpu.CompilerParams(
            dimension_semantics=("parallel", "arbitrary")),
    )(adj)


# ---------------------------------------------------------------------------
# Kernel 2 (one-time): A_hat tile = dinv[rows] * (A + I) * dinv[cols]
# ---------------------------------------------------------------------------
def _normalize_kernel(adj_ref, drow_ref, dcol_ref, ahat_ref):
    i = pl.program_id(0)
    j = pl.program_id(1)
    a = adj_ref[...].astype(jnp.float32)
    scale = drow_ref[...] * dcol_ref[...]          # (tile,1)*(1,tile) outer prod
    ahat_ref[...] = (a * scale).astype(ahat_ref.dtype)

    # Self loop (+1 on the global diagonal), gated to the N/tile diagonal
    # tiles only: off-diagonal tiles pay no iota/compare/add.
    # TODO(synk): PyG's gcn_norm skips nodes that already carry a self loop in
    #             `adj`; this kernel adds +1 unconditionally (like the ref).
    @pl.when(i == j)
    def _():
        rr = lax.broadcasted_iota(jnp.int32, a.shape, 0)
        cc = lax.broadcasted_iota(jnp.int32, a.shape, 1)
        eye = (rr == cc).astype(jnp.float32)
        ahat_ref[...] = ((a + eye) * scale).astype(ahat_ref.dtype)


def _normalize(adj, d_rows, d_cols, *, tile, out_dtype):
    n = adj.shape[0]
    return pl.pallas_call(
        _normalize_kernel,
        out_shape=jax.ShapeDtypeStruct((n, n), out_dtype),
        grid=(n // tile, n // tile),
        in_specs=[
            pl.BlockSpec((tile, tile), lambda i, j: (i, j)),   # A tile
            pl.BlockSpec((tile, 1), lambda i, j: (i, 0)),      # D^{-1/2} (rows)
            pl.BlockSpec((1, tile), lambda i, j: (0, j)),      # D^{-1/2} (cols)
        ],
        out_specs=pl.BlockSpec((tile, tile), lambda i, j: (i, j)),
        compiler_params=pltpu.CompilerParams(
            dimension_semantics=("parallel", "parallel")),
    )(adj, d_rows, d_cols)


# ---------------------------------------------------------------------------
# Kernel 3: reassociated head  Z0 = X @ W_pad   ([N, F] @ [F, Cpad]), bf16 MXU
# ---------------------------------------------------------------------------
def _head_kernel(x_ref, w_ref, z_ref, *, compute_dtype):
    z_ref[...] = jnp.dot(
        x_ref[...].astype(compute_dtype), w_ref[...].astype(compute_dtype),
        preferred_element_type=jnp.float32).astype(z_ref.dtype)


def _head(x, w_pad, *, tile, compute_dtype, out_dtype):
    n, f = x.shape
    cp = w_pad.shape[1]
    return pl.pallas_call(
        functools.partial(_head_kernel, compute_dtype=compute_dtype),
        out_shape=jax.ShapeDtypeStruct((n, cp), out_dtype),
        grid=(n // tile,),
        in_specs=[
            pl.BlockSpec((tile, f), lambda i: (i, 0)),
            pl.BlockSpec((f, cp), lambda i: (0, 0)),   # W resident
        ],
        out_specs=pl.BlockSpec((tile, cp), lambda i: (i, 0)),
        compiler_params=pltpu.CompilerParams(
            dimension_semantics=("parallel",),
            vmem_limit_bytes=_VMEM_LIMIT),
    )(x, w_pad)


# ---------------------------------------------------------------------------
# Kernel 4a (hot path, small graphs): fused K hops with A_hat VMEM-resident.
# grid=(K,); A_hat is DMA'd once (constant block index), Z lives in a VMEM
# scratch slab across hops, bias added on the final hop.
# ---------------------------------------------------------------------------
def _fused_kernel(ahat_ref, z0_ref, b_ref, out_ref, zbuf_ref):
    h = pl.program_id(0)

    @pl.when(h == 0)
    def _():
        zbuf_ref[...] = z0_ref[...].astype(jnp.float32)

    a = ahat_ref[...]
    z_new = jnp.dot(a, zbuf_ref[...].astype(a.dtype),
                    preferred_element_type=jnp.float32)
    zbuf_ref[...] = z_new

    @pl.when(h == pl.num_programs(0) - 1)
    def _():
        out_ref[...] = (z_new + b_ref[...]).astype(out_ref.dtype)


def _propagate_fused(a_hat, z0, b_pad, *, K, out_dtype):
    n, cp = z0.shape
    return pl.pallas_call(
        _fused_kernel,
        out_shape=jax.ShapeDtypeStruct((n, cp), out_dtype),
        grid=(K,),
        in_specs=[
            pl.BlockSpec((n, n), lambda h: (0, 0)),     # A_hat, resident
            pl.BlockSpec((n, cp), lambda h: (0, 0)),    # Z0
            pl.BlockSpec((1, cp), lambda h: (0, 0)),    # bias
        ],
        out_specs=pl.BlockSpec((n, cp), lambda h: (0, 0)),
        scratch_shapes=[pltpu.VMEM((n, cp), jnp.float32)],
        compiler_params=pltpu.CompilerParams(
            dimension_semantics=("arbitrary",),
            vmem_limit_bytes=_VMEM_LIMIT),
    )(a_hat, z0, b_pad)


# ---------------------------------------------------------------------------
# Kernel 4b (hot path, large graphs): one hop Z <- A_hat @ Z (+ bias on last).
# Decoupled tile_m x tile_k, reduction last/"arbitrary", rows "parallel",
# f32 accumulator scratch, Z held K-resident in VMEM and sliced in-kernel.
# ---------------------------------------------------------------------------
def _prop_accumulate(ahat_ref, z_ref, acc_ref, *, tile_k, z_resident):
    k = pl.program_id(1)

    @pl.when(k == 0)
    def _():
        acc_ref[...] = jnp.zeros_like(acc_ref)

    a = ahat_ref[...]
    if z_resident:
        off = pl.multiple_of(k * tile_k, tile_k)
        z_blk = z_ref[pl.ds(off, tile_k), :]
    else:
        z_blk = z_ref[...]
    acc_ref[...] += jnp.dot(a, z_blk.astype(a.dtype),
                            preferred_element_type=jnp.float32)


def _prop_kernel(ahat_ref, z_ref, out_ref, acc_ref, *, tile_k, z_resident):
    _prop_accumulate(ahat_ref, z_ref, acc_ref, tile_k=tile_k,
                     z_resident=z_resident)

    @pl.when(pl.program_id(1) == pl.num_programs(1) - 1)
    def _():
        out_ref[...] = acc_ref[...].astype(out_ref.dtype)


def _prop_kernel_bias(ahat_ref, z_ref, b_ref, out_ref, acc_ref, *,
                      tile_k, z_resident):
    _prop_accumulate(ahat_ref, z_ref, acc_ref, tile_k=tile_k,
                     z_resident=z_resident)

    @pl.when(pl.program_id(1) == pl.num_programs(1) - 1)
    def _():
        out_ref[...] = (acc_ref[...] + b_ref[...]).astype(out_ref.dtype)


def _propagate_stream(a_hat, z, b_pad, *, tile_m, tile_k, z_resident,
                      out_dtype):
    """One propagation hop; bias operand only present when b_pad is given."""
    n = a_hat.shape[0]
    cp = z.shape[1]
    if z_resident:
        z_spec = pl.BlockSpec((n, cp), lambda i, k: (0, 0))      # whole Z slab
    else:
        z_spec = pl.BlockSpec((tile_k, cp), lambda i, k: (k, 0))  # streamed
    in_specs = [pl.BlockSpec((tile_m, tile_k), lambda i, k: (i, k)), z_spec]
    operands = [a_hat, z]
    if b_pad is not None:
        in_specs.append(pl.BlockSpec((1, cp), lambda i, k: (0, 0)))
        operands.append(b_pad)
        kernel = functools.partial(_prop_kernel_bias, tile_k=tile_k,
                                   z_resident=z_resident)
    else:
        kernel = functools.partial(_prop_kernel, tile_k=tile_k,
                                   z_resident=z_resident)
    return pl.pallas_call(
        kernel,
        out_shape=jax.ShapeDtypeStruct((n, cp), out_dtype),
        grid=(n // tile_m, n // tile_k),
        in_specs=in_specs,
        out_specs=pl.BlockSpec((tile_m, cp), lambda i, k: (i, 0)),
        scratch_shapes=[pltpu.VMEM((tile_m, cp), jnp.float32)],
        compiler_params=pltpu.CompilerParams(
            dimension_semantics=("parallel", "arbitrary"),
            vmem_limit_bytes=_VMEM_LIMIT),
    )(*operands)


# ---------------------------------------------------------------------------
# Wrapper
# ---------------------------------------------------------------------------
def sgc_forward(x, adj, w, b, *, K=2, compute_dtype=jnp.bfloat16,
                use_fused=None, z_resident=None, tile_m=None, tile_k=None):
    """SGC forward. x: [N, F], adj: dense [N, N], w: [F, C], b: [1, C] -> [N, C]."""
    n, _ = x.shape
    c = w.shape[1]
    out_dtype = x.dtype
    ahat_bytes = jnp.dtype(compute_dtype).itemsize

    # Pad nodes to a multiple of 128 (coarser 256/512/1024 when the extra N^2
    # work stays under ~10%, so the propagation tiles can be large).  Padded
    # rows/cols are harmless (only a self loop, zero features) and are sliced
    # away.  Classes pad to a full 128-lane slab -> all stores are lane-dense.
    n_pad = _round_up(n, 128)
    for g in (1024, 512, 256):
        cand = _round_up(n, g)
        if cand * cand <= 1.1 * n_pad * n_pad:
            n_pad = cand
            break
    cp = _round_up(c, 128)

    if n_pad != n:
        adj = jnp.pad(adj, ((0, n_pad - n), (0, n_pad - n)))
        x = jnp.pad(x, ((0, n_pad - n), (0, 0)))
    w_pad = jnp.pad(w, ((0, 0), (0, cp - c)))
    b_pad = jnp.pad(b.astype(jnp.float32), ((0, 0), (0, cp - c)))

    # One-time normalization (hoisted out of the per-hop path).
    tile_n = _pick_tile(n_pad, 512)
    dinv = _compute_dinv(adj, tile=tile_n)            # [1, n_pad] f32
    d_rows = dinv.reshape(n_pad, 1)                   # layout plumbing only
    a_hat = _normalize(adj, d_rows, dinv, tile=tile_n, out_dtype=compute_dtype)

    # Reassociated head: Z0 = X @ W (dropout is identity at inference).
    # TODO(synk): training-mode feature dropout (pltpu PRNG) not implemented.
    z = _head(x, w_pad, tile=_pick_tile(n_pad, 512),
              compute_dtype=compute_dtype,
              out_dtype=jnp.float32 if K == 0 else compute_dtype)

    if K == 0:
        return (z + b_pad).astype(out_dtype)[:n, :c]

    if use_fused is None:
        use_fused = (2 * n_pad * n_pad * ahat_bytes
                     + 6 * n_pad * cp * 4) <= _FUSED_BUDGET
    if use_fused:
        # A_hat resident across all K hops: one HBM read of A_hat total.
        y = _propagate_fused(a_hat, z, b_pad, K=K, out_dtype=out_dtype)
    else:
        tile_m = tile_m or _pick_tile(n_pad, 512)
        tile_k = tile_k or _pick_tile(n_pad, 1024)
        if z_resident is None:
            z_resident = 2 * n_pad * cp * ahat_bytes <= _RESIDENT_Z_BUDGET
        y = z
        for hop in range(K):
            last = hop == K - 1
            y = z = _propagate_stream(
                a_hat, z, b_pad if last else None,
                tile_m=tile_m, tile_k=tile_k, z_resident=z_resident,
                out_dtype=out_dtype if last else compute_dtype)
    return y[:n, :c]


# ---------------------------------------------------------------------------
# Reference (original association: (A_hat^K X) W + b) and self-test
# ---------------------------------------------------------------------------
def _reference(x, adj, w, b, K):
    a = adj + jnp.eye(adj.shape[0], dtype=adj.dtype)
    deg = a.sum(axis=0)
    dinv = jnp.where(deg > 0, 1.0 / jnp.sqrt(deg), 0.0)
    a_hat = dinv[:, None] * a * dinv[None, :]
    h = x
    for _ in range(K):
        h = a_hat @ h
    return h @ w + b


if __name__ == "__main__":
    N, F, C, K = 256, 32, 8, 2

    key = jax.random.PRNGKey(0)
    k_adj, k_x, k_w, k_b = jax.random.split(key, 4)

    # Deterministic synthetic undirected graph: symmetric binary adjacency,
    # no explicit self loops (the kernels add them).
    r = jax.random.uniform(k_adj, (N, N))
    upper = jnp.triu((r < 0.05).astype(jnp.float32), k=1)
    adj = upper + upper.T
    x = jax.random.normal(k_x, (N, F), dtype=jnp.float32)

    # PyTorch Linear(in=F, out=C): weight [C, F], bias [C]; pre-transposed.
    w_pt = jax.random.normal(k_w, (C, F), dtype=jnp.float32) / jnp.sqrt(jnp.float32(F))
    b_pt = 0.01 * jax.random.normal(k_b, (C,), dtype=jnp.float32)
    w = w_pt.T                 # [F, C]
    b = b_pt.reshape(1, C)     # [1, C]

    ref = _reference(x, adj, w, b, K)

    # 1) Fused path (A_hat resident across hops), f32 exact — tight tolerance.
    out = jax.block_until_ready(
        sgc_forward(x, adj, w, b, K=K, compute_dtype=jnp.float32))
    assert out.shape == (N, C)
    assert jnp.allclose(out, ref, atol=1e-3, rtol=1e-3)

    # 2) Fused path, bf16 A_hat / MXU (production default) — loose tolerance.
    out = jax.block_until_ready(sgc_forward(x, adj, w, b, K=K))
    assert out.shape == (N, C)
    assert jnp.allclose(out, ref, atol=5e-2, rtol=5e-2)

    # 3) Streaming path (big-graph code path) forced with small tiles so the
    #    (rows, k) grid, accumulator and k-resident Z slicing are exercised.
    out = jax.block_until_ready(
        sgc_forward(x, adj, w, b, K=K, compute_dtype=jnp.float32,
                    use_fused=False, tile_m=128, tile_k=128))
    assert jnp.allclose(out, ref, atol=1e-3, rtol=1e-3)

    # 4) Streaming path, bf16, with the streamed-Z fallback (non-resident Z).
    out = jax.block_until_ready(
        sgc_forward(x, adj, w, b, K=K, use_fused=False, z_resident=False,
                    tile_m=128, tile_k=128))
    assert jnp.allclose(out, ref, atol=5e-2, rtol=5e-2)

    # 5) Padding path: N not a multiple of 128.
    N2 = 200
    adj2 = adj[:N2, :N2]
    x2 = x[:N2]
    ref2 = _reference(x2, adj2, w, b, K)
    out2 = jax.block_until_ready(
        sgc_forward(x2, adj2, w, b, K=K, compute_dtype=jnp.float32))
    assert out2.shape == (N2, C)
    assert jnp.allclose(out2, ref2, atol=1e-3, rtol=1e-3)

    print("KERNEL_OK")
</pallas_src>

<mosaic_0001>
module attributes {stable_mosaic.version = 11 : i64} {
  func.func @_dinv_kernel(%arg0: i32, %arg1: i32, %arg2: memref<256x256xf32, #tpu.memory_space<vmem>>, %arg3: memref<1x256xf32, #tpu.memory_space<vmem>>, %arg4: memref<8x256xf32, #tpu.memory_space<vmem>>) attributes {dimension_semantics = [#tpu.dimension_semantics<parallel>, #tpu.dimension_semantics<arbitrary>], iteration_bounds = array<i64: 1, 1>, scalar_prefetch = 0 : i64, scratch_operands = 1 : i64, tpu.core_type = #tpu.core_type<tc>, window_params = [{transform_indices = @transform_0, window_bounds = array<i64: 256, 256>}, {transform_indices = @transform_1, window_bounds = array<i64: 1, 256>}]} {
    %c0_i32 = arith.constant 0 : i32
    %0 = arith.cmpi eq, %arg1, %c0_i32 : i32
    %1 = arith.extui %0 : i1 to i32
    %c0_i32_0 = arith.constant 0 : i32
    %2 = arith.cmpi ne, %1, %c0_i32_0 : i32
    scf.if %2 {
      %cst_8 = arith.constant 0.000000e+00 : f32
      %12 = vector.broadcast %cst_8 : f32 to vector<8x256xf32>
      %c0_9 = arith.constant 0 : index
      %c0_10 = arith.constant 0 : index
      %13 = vector.load %arg4[%c0_9, %c0_10] : memref<8x256xf32, #tpu.memory_space<vmem>>, vector<8x256xf32>
      tpu.vector_store %arg4[%c0_9, %c0_10], %12 {strides = array<i32>} : memref<8x256xf32, #tpu.memory_space<vmem>>, vector<8x256xf32>,
    } else {
    }
    %c0 = arith.constant 0 : index
    %c0_1 = arith.constant 0 : index
    %3 = vector.load %arg2[%c0, %c0_1] : memref<256x256xf32, #tpu.memory_space<vmem>>, vector<256x256xf32>
    %c0_2 = arith.constant 0 : index
    %c0_3 = arith.constant 0 : index
    %4 = vector.load %arg4[%c0_2, %c0_3] : memref<8x256xf32, #tpu.memory_space<vmem>>, vector<8x256xf32>
    %5 = vector.shape_cast %3 : vector<256x256xf32> to vector<32x8x256xf32>
    %cst = arith.constant dense<0.000000e+00> : vector<8x256xf32>
    %6 = vector.multi_reduction <add>, %5, %cst [0] : vector<32x8x256xf32> to vector<8x256xf32>
    %7 = arith.addf %4, %6 : vector<8x256xf32>
    %c0_4 = arith.constant 0 : index
    %c0_5 = arith.constant 0 : index
    %8 = vector.load %arg4[%c0_4, %c0_5] : memref<8x256xf32, #tpu.memory_space<vmem>>, vector<8x256xf32>
    tpu.vector_store %arg4[%c0_4, %c0_5], %7 {strides = array<i32>} : memref<8x256xf32, #tpu.memory_space<vmem>>, vector<8x256xf32>,
    %c0_i32_6 = arith.constant 0 : i32
    %9 = arith.cmpi eq, %arg1, %c0_i32_6 : i32
    %10 = arith.extui %9 : i1 to i32
    %c0_i32_7 = arith.constant 0 : i32
    %11 = arith.cmpi ne, %10, %c0_i32_7 : i32
    scf.if %11 {
      %c0_8 = arith.constant 0 : index
      %c0_9 = arith.constant 0 : index
      %12 = vector.load %arg4[%c0_8, %c0_9] : memref<8x256xf32, #tpu.memory_space<vmem>>, vector<8x256xf32>
      %cst_10 = arith.constant dense<0.000000e+00> : vector<256xf32>
      %13 = vector.multi_reduction <add>, %12, %cst_10 [0] : vector<8x256xf32> to vector<256xf32>
      %14 = vector.shape_cast %13 : vector<256xf32> to vector<1x256xf32>
      %cst_11 = arith.constant 1.000000e+00 : f32
      %15 = vector.broadcast %cst_11 : f32 to vector<1x256xf32>
      %16 = arith.addf %14, %15 : vector<1x256xf32>
      %cst_12 = arith.constant 0.000000e+00 : f32
      %17 = vector.broadcast %cst_12 : f32 to vector<1x256xf32>
      %18 = arith.cmpf ogt, %16, %17 : vector<1x256xf32>
      %19 = math.rsqrt %16 : vector<1x256xf32>
      %cst_13 = arith.constant 0.000000e+00 : f32
      %20 = vector.broadcast %cst_13 : f32 to vector<1x256xf32>
      %21 = arith.select %18, %19, %20 : vector<1x256xi1>, vector<1x256xf32>
      %c0_14 = arith.constant 0 : index
      %c0_15 = arith.constant 0 : index
      %22 = vector.load %arg3[%c0_14, %c0_15] : memref<1x256xf32, #tpu.memory_space<vmem>>, vector<1x256xf32>
      tpu.vector_store %arg3[%c0_14, %c0_15], %21 {strides = array<i32>} : memref<1x256xf32, #tpu.memory_space<vmem>>, vector<1x256xf32>,
    } else {
    }
    return
  }
  func.func @transform_0(%arg0: i32, %arg1: i32) -> (i32, i32) {
    %c0_i32 = arith.constant 0 : i32
    return %arg1, %arg0 : i32, i32
  }
  func.func @transform_1(%arg0: i32, %arg1: i32) -> (i32, i32) {
    %c0_i32 = arith.constant 0 : i32
    %c0_i32_0 = arith.constant 0 : i32
    return %c0_i32, %arg0 : i32, i32
  }
}

</mosaic_0001>

<llo_original>
// kernel: tpu_custom_call.1
$region0: #{tpu_custom_call.1}
  #allocation0 [shape = 'u32[]', space=smem, size = 0x4, offset = 0x4, fixed_abs, tag = 'smem constant byte address 0x4 - core index']
  #allocation1 [shape = 'u32[144,128]{1,0:T(1,128)}', space=vmem, size = 0x12000, scoped, tag = 'internal scratch']
  #allocation2 [shape = 'f32[8,256]{1,0:T(8,128)}', space=vmem, size = 0x2000, scoped, tag = 'scratch operand']
  %s0 = inlined_call_operand.hbm [shape: f32[256,256], index: 0, kind: input, shape index: {}]
  %s1 = inlined_call_operand.hbm [shape: f32[1,256], index: 1, kind: output, shape index: {}]
  %s2 = sld [smem:[#allocation0]]
  $region26: #{tpu_custom_call.1} parent=0
    _
  %s4 = ssub.s32 1, %s2
  %s5 = scalar_select 0, %s4, %s2
  $region1: #{tpu_custom_call.1} parent=0
    #allocation3 [shape = 'u8[262144]{0}', space=vmem, size = 0x40000, scoped, tag = 'input window, operand 0, single buffered']
    #allocation4 [shape = 's32[1]{0}', space=sflag, size = 0x4, scoped, tag = 'scoped memory for tpu_custom_call.1']
    #allocation5 [shape = 's32[1]{0}', space=sflag, size = 0x4, scoped, tag = 'scoped memory for tpu_custom_call.1']
    #allocation6 [shape = 'u8[1024]{0}', space=vmem, size = 0x400, scoped, tag = 'output window, operand 0, single buffered']
    %6 = vsyncpa [#allocation4], 0
    %7 = vsyncpa [#allocation5], 0
    // Predicated region
    $region2: #{tpu_custom_call.1} parent=1 // pred_check
      _
    $region3: #{tpu_custom_call.1} parent=1 // pred_check_branch
      %9 = sbr.rel (0) target = $region5
    $region4: #{tpu_custom_call.1} parent=1 // pred_region
      %s11 = ssub.s32 8192, 8192
      %12 = vsyncadd [#allocation4], %s11
      %s13 = sshll.u32 [#allocation3], 4
      %s14 = int_to_ptr.vmem [resolvable:$true] %s13
      %19 = dma.hbm_to_vmem [thread:$0]  %s0, 8192, %s14, [#allocation4], 256, 256, 16
    $region5: #{tpu_custom_call.1} parent=1 // pred_fallthru
      _
    // Predicated region
    $region6: #{tpu_custom_call.1} parent=1 // pred_check
      _
    $region7: #{tpu_custom_call.1} parent=1 // pred_check_branch
      %21 = sbr.rel (0) target = $region9
    $region8: #{tpu_custom_call.1} parent=1 // pred_region
      %22 = dma.done [#allocation4], 8192
    $region9: #{tpu_custom_call.1} parent=1 // pred_fallthru
      _
    %p23 = scmp.eq.s32.totalorder 0, 0
    // Predicated region
    $region10: #{tpu_custom_call.1} parent=1 // pred_check
      %p24 = pneg %p23
    $region11: #{tpu_custom_call.1} parent=1 // pred_check_branch
      %26 = sbr.rel (%p24) target = $region13
    $region12: #{tpu_custom_call.1} parent=1 // pred_region
      %27 = vst [vmem:[#allocation2] sm:$0xff] 0.0
      %28 = vst [vmem:[#allocation2 + $0x8] sm:$0xff] 0.0
    $region13: #{tpu_custom_call.1} parent=1 // pred_fallthru
      _
    %v29 = vld [vmem:[#allocation3] sm:$0xff]
    %v30 = vld [vmem:[#allocation3 + $0x8] sm:$0xff]
    %v31 = vld [vmem:[#allocation3 + $0x10] sm:$0xff]
    %v32 = vld [vmem:[#allocation3 + $0x18] sm:$0xff]
    %v33 = vld [vmem:[#allocation3 + $0x20] sm:$0xff]
    %v34 = vld [vmem:[#allocation3 + $0x28] sm:$0xff]
    %v35 = vld [vmem:[#allocation3 + $0x30] sm:$0xff]
    %v36 = vld [vmem:[#allocation3 + $0x38] sm:$0xff]
    %v37 = vld [vmem:[#allocation3 + $0x40] sm:$0xff]
    %v38 = vld [vmem:[#allocation3 + $0x48] sm:$0xff]
    %v39 = vld [vmem:[#allocation3 + $0x50] sm:$0xff]
    %v40 = vld [vmem:[#allocation3 + $0x58] sm:$0xff]
    %v41 = vld [vmem:[#allocation3 + $0x60] sm:$0xff]
    %v42 = vld [vmem:[#allocation3 + $0x68] sm:$0xff]
    %v43 = vld [vmem:[#allocation3 + $0x70] sm:$0xff]
    %v44 = vld [vmem:[#allocation3 + $0x78] sm:$0xff]
    %v45 = vld [vmem:[#allocation3 + $0x80] sm:$0xff]
    %v46 = vld [vmem:[#allocation3 + $0x88] sm:$0xff]
    %v47 = vld [vmem:[#allocation3 + $0x90] sm:$0xff]
    %v48 = vld [vmem:[#allocation3 + $0x98] sm:$0xff]
    %v49 = vld [vmem:[#allocation3 + $0xa0] sm:$0xff]
    %v50 = vld [vmem:[#allocation3 + $0xa8] sm:$0xff]
    %v51 = vld [vmem:[#allocation3 + $0xb0] sm:$0xff]
    %v52 = vld [vmem:[#allocation3 + $0xb8] sm:$0xff]
    %v53 = vld [vmem:[#allocation3 + $0xc0] sm:$0xff]
    %v54 = vld [vmem:[#allocation3 + $0xc8] sm:$0xff]
    %v55 = vld [vmem:[#allocation3 + $0xd0] sm:$0xff]
    %v56 = vld [vmem:[#allocation3 + $0xd8] sm:$0xff]
    %v57 = vld [vmem:[#allocation3 + $0xe0] sm:$0xff]
    %v58 = vld [vmem:[#allocation3 + $0xe8] sm:$0xff]
    %v59 = vld [vmem:[#allocation3 + $0xf0] sm:$0xff]
    %v60 = vld [vmem:[#allocation3 + $0xf8] sm:$0xff]
    %v61 = vld [vmem:[#allocation3 + $0x100] sm:$0xff]
    %v62 = vld [vmem:[#allocation3 + $0x108] sm:$0xff]
    %v63 = vld [vmem:[#allocation3 + $0x110] sm:$0xff]
    %v64 = vld [vmem:[#allocation3 + $0x118] sm:$0xff]
    %v65 = vld [vmem:[#allocation3 + $0x120] sm:$0xff]
    %v66 = vld [vmem:[#allocation3 + $0x128] sm:$0xff]
    %v67 = vld [vmem:[#allocation3 + $0x130] sm:$0xff]
    %v68 = vld [vmem:[#allocation3 + $0x138] sm:$0xff]
    %v69 = vld [vmem:[#allocation3 + $0x140] sm:$0xff]
    %v70 = vld [vmem:[#allocation3 + $0x148] sm:$0xff]
    %v71 = vld [vmem:[#allocation3 + $0x150] sm:$0xff]
    %v72 = vld [vmem:[#allocation3 + $0x158] sm:$0xff]
    %v73 = vld [vmem:[#allocation3 + $0x160] sm:$0xff]
    %v74 = vld [vmem:[#allocation3 + $0x168] sm:$0xff]
    %v75 = vld [vmem:[#allocation3 + $0x170] sm:$0xff]
    %v76 = vld [vmem:[#allocation3 + $0x178] sm:$0xff]
    %v77 = vld [vmem:[#allocation3 + $0x180] sm:$0xff]
    %v78 = vld [vmem:[#allocation3 + $0x188] sm:$0xff]
    %v79 = vld [vmem:[#allocation3 + $0x190] sm:$0xff]
    %v80 = vld [vmem:[#allocation3 + $0x198] sm:$0xff]
    %v81 = vld [vmem:[#allocation3 + $0x1a0] sm:$0xff]
    %v82 = vld [vmem:[#allocation3 + $0x1a8] sm:$0xff]
    %v83 = vld [vmem:[#allocation3 + $0x1b0] sm:$0xff]
    %v84 = vld [vmem:[#allocation3 + $0x1b8] sm:$0xff]
    %v85 = vld [vmem:[#allocation3 + $0x1c0] sm:$0xff]
    %v86 = vld [vmem:[#allocation3 + $0x1c8] sm:$0xff]
    %v87 = vld [vmem:[#allocation3 + $0x1d0] sm:$0xff]
    %v88 = vld [vmem:[#allocation3 + $0x1d8] sm:$0xff]
    %v89 = vld [vmem:[#allocation3 + $0x1e0] sm:$0xff]
    %v90 = vld [vmem:[#allocation3 + $0x1e8] sm:$0xff]
    %v91 = vld [vmem:[#allocation3 + $0x1f0] sm:$0xff]
    %v92 = vld [vmem:[#allocation3 + $0x1f8] sm:$0xff]
    %v93 = vld [vmem:[#allocation2] sm:$0xff]
    %v94 = vld [vmem:[#allocation2 + $0x8] sm:$0xff]
    %v95 = vadd.f32 %v29, %v31
    %v96 = vadd.f32 %v95, %v33
    %v97 = vadd.f32 %v96, %v35
    %v98 = vadd.f32 %v97, %v37
    %v99 = vadd.f32 %v98, %v39
    %v100 = vadd.f32 %v99, %v41
    %v101 = vadd.f32 %v100, %v43
    %v102 = vadd.f32 %v101, %v45
    %v103 = vadd.f32 %v102, %v47
    %v104 = vadd.f32 %v103, %v49
    %v105 = vadd.f32 %v104, %v51
    %v106 = vadd.f32 %v105, %v53
    %v107 = vadd.f32 %v106, %v55
    %v108 = vadd.f32 %v107, %v57
    %v109 = vadd.f32 %v108, %v59
    %v110 = vadd.f32 %v109, %v61
    %v111 = vadd.f32 %v110, %v63
    %v112 = vadd.f32 %v111, %v65
    %v113 = vadd.f32 %v112, %v67
    %v114 = vadd.f32 %v113, %v69
    %v115 = vadd.f32 %v114, %v71
    %v116 = vadd.f32 %v115, %v73
    %v117 = vadd.f32 %v116, %v75
    %v118 = vadd.f32 %v117, %v77
    %v119 = vadd.f32 %v118, %v79
    %v120 = vadd.f32 %v119, %v81
    %v121 = vadd.f32 %v120, %v83
    %v122 = vadd.f32 %v121, %v85
    %v123 = vadd.f32 %v122, %v87
    %v124 = vadd.f32 %v123, %v89
    %v125 = vadd.f32 %v124, %v91
    %v126 = vadd.f32 %v30, %v32
    %v127 = vadd.f32 %v126, %v34
    %v128 = vadd.f32 %v127, %v36
    %v129 = vadd.f32 %v128, %v38
    %v130 = vadd.f32 %v129, %v40
    %v131 = vadd.f32 %v130, %v42
    %v132 = vadd.f32 %v131, %v44
    %v133 = vadd.f32 %v132, %v46
    %v134 = vadd.f32 %v133, %v48
    %v135 = vadd.f32 %v134, %v50
    %v136 = vadd.f32 %v135, %v52
    %v137 = vadd.f32 %v136, %v54
    %v138 = vadd.f32 %v137, %v56
    %v139 = vadd.f32 %v138, %v58
    %v140 = vadd.f32 %v139, %v60
    %v141 = vadd.f32 %v140, %v62
    %v142 = vadd.f32 %v141, %v64
    %v143 = vadd.f32 %v142, %v66
    %v144 = vadd.f32 %v143, %v68
    %v145 = vadd.f32 %v144, %v70
    %v146 = vadd.f32 %v145, %v72
    %v147 = vadd.f32 %v146, %v74
    %v148 = vadd.f32 %v147, %v76
    %v149 = vadd.f32 %v148, %v78
    %v150 = vadd.f32 %v149, %v80
    %v151 = vadd.f32 %v150, %v82
    %v152 = vadd.f32 %v151, %v84
    %v153 = vadd.f32 %v152, %v86
    %v154 = vadd.f32 %v153, %v88
    %v155 = vadd.f32 %v154, %v90
    %v156 = vadd.f32 %v155, %v92
    %v157 = vadd.f32 %v93, %v125
    %v158 = vadd.f32 %v94, %v156
    %159 = vst [vmem:[#allocation2] sm:$0xff] %v157
    %160 = vst [vmem:[#allocation2 + $0x8] sm:$0xff] %v158
    // Predicated region
    $region14: #{tpu_custom_call.1} parent=1 // pred_check
      %p161 = pneg %p23
    $region15: #{tpu_custom_call.1} parent=1 // pred_check_branch
      %163 = sbr.rel (%p161) target = $region17
    $region16: #{tpu_custom_call.1} parent=1 // pred_region
      %v164 = vld [vmem:[#allocation2] sm:$0xff]
      %v165 = vld [vmem:[#allocation2 + $0x8] sm:$0xff]
      %v166 = vrot.slane %v164, 4
      %v167 = vadd.f32 %v164, %v166
      %v168 = vrot.slane %v167, 2
      %v169 = vadd.f32 %v167, %v168
      %v170 = vrot.slane %v169, 1
      %v171 = vadd.f32 %v169, %v170
      %v172 = vrot.slane %v165, 4
      %v173 = vadd.f32 %v165, %v172
      %v174 = vrot.slane %v173, 2
      %v175 = vadd.f32 %v173, %v174
      %v176 = vrot.slane %v175, 1
      %v177 = vadd.f32 %v175, %v176
      %v178 = vadd.f32 %v171, 1.0
      %v179 = vadd.f32 %v177, 1.0
      %vm180 = vcmp.gt.f32.partialorder %v178, 0.0
      %vm181 = vcmp.gt.f32.partialorder %v179, 0.0
      %v182 = vrsqrt.pop %v178
      %v183 = vrsqrt.pop %v179
      %v184 = vsel %vm180, %v182, 0.0
      %v185 = vsel %vm181, %v183, 0.0
      %v188 = vcombine.low %v184, %v185
      %v190 = vunpack.c.l.s4 1966171168
      %v191 = vunpack.c.0.s8 %v190
      %v192 = vlaneseq
      %v193 = vshrl.u32 %v192, 7
      %v194 = vsub.s32 %v191, %v193
      %v195 = vrot.slane %v188, %v194
      %v197 = vunpack.c.l.s4 1966171168
      %v198 = vunpack.c.0.s8 %v197
      %v199 = vlaneseq
      %v200 = vshrl.u32 %v199, 7
      %v201 = vsub.s32 %v198, %v200
      %v202 = vrot.slane %v195, %v201
      %v204 = vlaneseq
      %vm205 = vcmp.ge.s32.totalorder %v204, 0
      %vm206 = vcmp.lt.s32.totalorder %v204, 256
      %vm207 = vmand %vm205, %vm206
      %208 = vst.msk [vmem:[#allocation6] sm:$0x3] %vm207, %v202
    $region17: #{tpu_custom_call.1} parent=1 // pred_fallthru
      _
    // Predicated region
    $region18: #{tpu_custom_call.1} parent=1 // pred_check
      _
    $region19: #{tpu_custom_call.1} parent=1 // pred_check_branch
      %210 = sbr.rel (0) target = $region21
    $region20: #{tpu_custom_call.1} parent=1 // pred_region
      %s212 = ssub.s32 32, 32
      %213 = vsyncadd [#allocation5], %s212
      %s215 = sshll.u32 [#allocation6], 4
      %s216 = int_to_ptr.vmem [resolvable:$true] %s215
      %218 = dma.vmem_to_hbm [thread:$0]  %s216, 32, %s1, [#allocation5]
    $region21: #{tpu_custom_call.1} parent=1 // pred_fallthru
      _
    // Predicated region
    $region22: #{tpu_custom_call.1} parent=1 // pred_check
      _
    $region23: #{tpu_custom_call.1} parent=1 // pred_check_branch
      %220 = sbr.rel (0) target = $region25
    $region24: #{tpu_custom_call.1} parent=1 // pred_region
      %221 = dma.done [#allocation5], 32
    $region25: #{tpu_custom_call.1} parent=1 // pred_fallthru
      _
    %222 = vsyncpa [#allocation4], 1
    %223 = vsyncpa [#allocation5], 1

</llo_original>
